<compile_context>
chip_gen: v5e
topology: v5e:2x2
jax: 0.10.0
libtpu: 0.0.40
codegen_flags: <defaults>
</compile_context>

<pallas_src>
import functools

import jax
import jax.numpy as jnp
from jax.experimental import pallas as pl
from jax.experimental.pallas import tpu as pltpu

EPS = 1e-5
NEG_SLOPE = 0.2
_VMEM_LIMIT = 32 * 1024 * 1024        # scoped-VMEM request, safe on v5e/v6e/v7x
_PASS1_WS_BUDGET = 20 * 1024 * 1024   # double-buffered pass-1 working-set cap


def _round_up(x, m):
    return (x + m - 1) // m * m


def _cdiv(a, b):
    return (a + b - 1) // b


# --------------------------------------------------------------------------
# Pass 1 (GK == 1): resident-weight matmul + streaming per-channel stats.
# --------------------------------------------------------------------------
def _conv_stats_kernel_kres(p_ref, w_ref, y_ref, s1_ref, s2_ref):
    # p_ref: [1, TP, Kp] bf16   w_ref: [Kp, Cp] bf16 (constant block index)
    # y_ref: [1, TP, Cp] bf16   s1/s2_ref: [1, 1, Cp] f32
    y = jnp.dot(p_ref[0], w_ref[...], preferred_element_type=jnp.float32)
    y_ref[0] = y.astype(y_ref.dtype)
    s1_ref[...] = jnp.sum(y, axis=0, keepdims=True)[None]
    s2_ref[...] = jnp.sum(y * y, axis=0, keepdims=True)[None]


# --------------------------------------------------------------------------
# Pass 1 (GK > 1): K-tiled matmul with resident f32 accumulator.
# --------------------------------------------------------------------------
def _conv_stats_kernel_kacc(p_ref, w_ref, y_ref, s1_ref, s2_ref, acc_ref):
    k = pl.program_id(2)
    prod = jnp.dot(p_ref[0], w_ref[...], preferred_element_type=jnp.float32)

    @pl.when(k == 0)
    def _init():
        acc_ref[...] = prod          # assign, not zero+add

    @pl.when(k > 0)
    def _acc():
        acc_ref[...] += prod

    @pl.when(k == pl.num_programs(2) - 1)
    def _finalize():
        y = acc_ref[...]
        y_ref[0] = y.astype(y_ref.dtype)
        s1_ref[...] = jnp.sum(y, axis=0, keepdims=True)[None]
        s2_ref[...] = jnp.sum(y * y, axis=0, keepdims=True)[None]


# --------------------------------------------------------------------------
# Pass 2: fold BN stats -> scale/shift in-kernel, LeakyReLU, and write the
# tile transposed (channel-major) so the NCHW layout change is fused here.
# --------------------------------------------------------------------------
def _bn_lrelu_nchw_kernel(y_ref, s1_ref, s2_ref, g_ref, b_ref, o_ref, *,
                          inv_count, eps, neg_slope):
    # y_ref:  [1, TP2, TC] bf16 conv output tile
    # s1/s2:  [NG, 1, TC]  f32 per-tile channel sums / sumsq (all tiles)
    # g/b:    [1, TC]      f32 gamma / beta
    # o_ref:  [1, TC, TP2] out_dtype, channel-major
    s1 = jnp.sum(s1_ref[...], axis=0)                      # (1, TC)
    s2 = jnp.sum(s2_ref[...], axis=0)                      # (1, TC)
    mean = s1 * inv_count
    var = jnp.maximum(s2 * inv_count - mean * mean, 0.0)   # biased variance
    scale = g_ref[...] * jax.lax.rsqrt(var + eps)
    shift = b_ref[...] - mean * scale
    z = y_ref[0].astype(jnp.float32) * scale + shift       # (TP2, TC)
    z = jnp.where(z >= 0, z, neg_slope * z)
    o_ref[0] = jnp.transpose(z).astype(o_ref.dtype)        # (TC, TP2)


def _patches_nhwc(x, k, stride, pad):
    """x: [N, Cin, H, W] f32 -> bf16 patches [N, OH*OW, k*k*Cin], (kh,kw,cin)."""
    N, C, H, W = x.shape
    OH = (H + 2 * pad - k) // stride + 1
    OW = (W + 2 * pad - k) // stride + 1
    xh = jnp.pad(x.astype(jnp.bfloat16).transpose(0, 2, 3, 1),
                 ((0, 0), (pad, pad), (pad, pad), (0, 0)))
    taps = [xh[:, ki:ki + stride * OH:stride, kj:kj + stride * OW:stride, :]
            for ki in range(k) for kj in range(k)]
    patches = jnp.concatenate(taps, axis=-1)               # (N, OH, OW, k*k*C)
    return patches.reshape(N, OH * OW, k * k * C), OH, OW


@functools.partial(jax.jit,
                   static_argnames=("kernel_size", "stride", "padding",
                                    "out_dtype"))
def discriminator_cnn_block(x, conv_weight, bn_gamma, bn_beta,
                            kernel_size=4, stride=2, padding=1,
                            out_dtype=jnp.bfloat16):
    """Forward pass of DiscriminatorCNNBlock.

    x:           [N, Cin, H, W]      (NCHW, matching PyTorch)
    conv_weight: [Cout, Cin, kH, kW] (PyTorch Conv2d layout, bias=False)
    bn_gamma:    [Cout]
    bn_beta:     [Cout]
    returns:     [N, Cout, OH, OW] in out_dtype (bf16 by default; pass
                 jnp.float32 for full-precision writeback).
    """
    N, Cin, H, W = x.shape
    Cout = conv_weight.shape[0]
    k = kernel_size

    patches, OH, OW = _patches_nhwc(x, k, stride, padding)
    OHW = OH * OW
    Kdim = k * k * Cin
    count = N * OHW                                         # true BN count

    # ---- Hardware-aligned tile plan -------------------------------------
    # Lane-dense Cout; pad to 256-multiples when Cout > 128 (v6e/v7x MXU is
    # 2x256x256 wide; 128-lane output tiles leave half the array idle).
    Cp = 128 if Cout <= 128 else _round_up(Cout, 256)
    Kp = _round_up(Kdim, 128)
    if Kp * Cp * 2 <= 4 * 1024 * 1024:
        TK = Kp                     # weight fully resident in VMEM, GK == 1
    else:
        TK = 512
        Kp = _round_up(Kp, TK)
    GK = Kp // TK

    # Spatial (M) tiles: multiples of 128 (bf16-safe, lane-dense transposes).
    TP = min(1024, _round_up(OHW, 128))
    if N == 1 and _cdiv(OHW, TP) < 2 and OHW > 128:
        TP = _round_up(_cdiv(OHW, 2), 128)   # v7x: keep both TensorCores busy

    def _ws(tp):   # pass-1 double-buffered VMEM working set (bytes)
        return (2 * tp * TK * 2 + 2 * TK * Cp * 2 + 2 * tp * Cp * 2
                + (tp * Cp * 4 if GK > 1 else 0))
    while _ws(TP) > _PASS1_WS_BUDGET and TP > 128:
        TP = max(128, _round_up(TP // 2, 128))

    OHWp = _round_up(OHW, TP)
    GP = OHWp // TP
    NG = N * GP

    # Zero-padded rows / K-columns / channels are mathematically inert.
    patches = jnp.pad(patches, ((0, 0), (0, OHWp - OHW), (0, Kp - Kdim)))
    w_mat = conv_weight.astype(jnp.bfloat16).transpose(2, 3, 1, 0)
    w_mat = jnp.pad(w_mat.reshape(Kdim, Cout), ((0, Kp - Kdim), (0, Cp - Cout)))
    gamma = jnp.pad(bn_gamma.astype(jnp.float32), (0, Cp - Cout)).reshape(1, Cp)
    beta = jnp.pad(bn_beta.astype(jnp.float32), (0, Cp - Cout)).reshape(1, Cp)

    # ---- Pass 1: conv-as-matmul (MXU) + streaming per-channel stats ------
    y_shape = jax.ShapeDtypeStruct((N, OHWp, Cp), jnp.bfloat16)
    s_shape = jax.ShapeDtypeStruct((NG, 1, Cp), jnp.float32)

    if GK == 1:
        y, s1, s2 = pl.pallas_call(
            _conv_stats_kernel_kres,
            out_shape=(y_shape, s_shape, s_shape),
            grid=(N, GP),
            in_specs=[
                pl.BlockSpec((1, TP, TK), lambda n, p: (n, p, 0)),
                pl.BlockSpec((TK, Cp), lambda n, p: (0, 0)),   # resident weight
            ],
            out_specs=(
                pl.BlockSpec((1, TP, Cp), lambda n, p: (n, p, 0)),
                pl.BlockSpec((1, 1, Cp), lambda n, p: (n * GP + p, 0, 0)),
                pl.BlockSpec((1, 1, Cp), lambda n, p: (n * GP + p, 0, 0)),
            ),
            compiler_params=pltpu.CompilerParams(
                dimension_semantics=("parallel", "parallel"),
                vmem_limit_bytes=_VMEM_LIMIT),
        )(patches, w_mat)
    else:
        y, s1, s2 = pl.pallas_call(
            _conv_stats_kernel_kacc,
            out_shape=(y_shape, s_shape, s_shape),
            grid=(N, GP, GK),
            in_specs=[
                pl.BlockSpec((1, TP, TK), lambda n, p, kk: (n, p, kk)),
                pl.BlockSpec((TK, Cp), lambda n, p, kk: (kk, 0)),
            ],
            out_specs=(
                pl.BlockSpec((1, TP, Cp), lambda n, p, kk: (n, p, 0)),
                pl.BlockSpec((1, 1, Cp), lambda n, p, kk: (n * GP + p, 0, 0)),
                pl.BlockSpec((1, 1, Cp), lambda n, p, kk: (n * GP + p, 0, 0)),
            ),
            scratch_shapes=[pltpu.VMEM((TP, Cp), jnp.float32)],
            compiler_params=pltpu.CompilerParams(
                dimension_semantics=("parallel", "parallel", "arbitrary"),
                vmem_limit_bytes=_VMEM_LIMIT),
        )(patches, w_mat)

    # ---- Pass 2: BN fold + LeakyReLU + fused NCHW writeback --------------
    TC = min(Cp, 256)               # divides Cp by construction
    GC = Cp // TC
    TP2 = min(OHWp, 1024)
    while OHWp % TP2:
        TP2 //= 2                   # stays a multiple of 128
    GP2 = OHWp // TP2

    kern2 = functools.partial(_bn_lrelu_nchw_kernel,
                              inv_count=1.0 / count, eps=EPS,
                              neg_slope=NEG_SLOPE)
    out_nc = pl.pallas_call(
        kern2,
        out_shape=jax.ShapeDtypeStruct((N, Cp, OHWp), out_dtype),
        grid=(N, GC, GP2),
        in_specs=[
            pl.BlockSpec((1, TP2, TC), lambda n, c, p: (n, p, c)),
            pl.BlockSpec((NG, 1, TC), lambda n, c, p: (0, 0, c)),
            pl.BlockSpec((NG, 1, TC), lambda n, c, p: (0, 0, c)),
            pl.BlockSpec((1, TC), lambda n, c, p: (0, c)),
            pl.BlockSpec((1, TC), lambda n, c, p: (0, c)),
        ],
        out_specs=pl.BlockSpec((1, TC, TP2), lambda n, c, p: (n, c, p)),
        compiler_params=pltpu.CompilerParams(
            dimension_semantics=("parallel", "parallel", "parallel"),
            vmem_limit_bytes=_VMEM_LIMIT),
    )(y, s1, s2, gamma, beta)

    # Only padding is trimmed here; no full-array transpose remains.
    return out_nc[:, :Cout, :OHW].reshape(N, Cout, OH, OW)


if __name__ == "__main__":
    key = jax.random.PRNGKey(0)
    k_x, k_w = jax.random.split(key)

    N, Cin, H, W = 2, 4, 16, 16
    Cout, ksize = 8, 4

    x = jax.random.normal(k_x, (N, Cin, H, W), dtype=jnp.float32)
    conv_weight = jax.random.normal(
        k_w, (Cout, Cin, ksize, ksize), dtype=jnp.float32) * 0.1
    # BatchNorm2d default init: gamma=1, beta=0.
    bn_gamma = jnp.ones((Cout,), dtype=jnp.float32)
    bn_beta = jnp.zeros((Cout,), dtype=jnp.float32)

    out = discriminator_cnn_block(x, conv_weight, bn_gamma, bn_beta)
    jax.block_until_ready(out)
    assert out.shape == (N, Cout, H // 2, W // 2), out.shape

    # Reference: f32 conv -> train-mode BatchNorm -> LeakyReLU(0.2).
    yref = jax.lax.conv_general_dilated(
        x, conv_weight, window_strides=(2, 2), padding=((1, 1), (1, 1)),
        dimension_numbers=("NCHW", "OIHW", "NCHW"))
    mu = yref.mean(axis=(0, 2, 3), keepdims=True)
    var = yref.var(axis=(0, 2, 3), keepdims=True)
    zref = (yref - mu) * jax.lax.rsqrt(var + EPS)
    zref = zref * bn_gamma.reshape(1, -1, 1, 1) + bn_beta.reshape(1, -1, 1, 1)
    ref = jnp.where(zref >= 0, zref, NEG_SLOPE * zref)
    err = float(jnp.max(jnp.abs(out.astype(jnp.float32) - ref)))
    assert err < 0.2, f"max abs error vs reference too large: {err}"

    print("KERNEL_OK")
</pallas_src>

<mosaic_0001>
module attributes {stable_mosaic.version = 11 : i64} {
  func.func @_bn_lrelu_nchw_kernel(%arg0: i32, %arg1: i32, %arg2: i32, %arg3: memref<1x128x128xbf16, #tpu.memory_space<vmem>>, %arg4: memref<2x1x128xf32, #tpu.memory_space<vmem>>, %arg5: memref<2x1x128xf32, #tpu.memory_space<vmem>>, %arg6: memref<1x128xf32, #tpu.memory_space<vmem>>, %arg7: memref<1x128xf32, #tpu.memory_space<vmem>>, %arg8: memref<1x128x128xbf16, #tpu.memory_space<vmem>>) attributes {dimension_semantics = [#tpu.dimension_semantics<parallel>, #tpu.dimension_semantics<parallel>, #tpu.dimension_semantics<parallel>], iteration_bounds = array<i64: 2, 1, 1>, scalar_prefetch = 0 : i64, scratch_operands = 0 : i64, tpu.core_type = #tpu.core_type<tc>, window_params = [{transform_indices = @transform_0, window_bounds = array<i64: 1, 128, 128>}, {transform_indices = @transform_1, window_bounds = array<i64: 2, 1, 128>}, {transform_indices = @transform_2, window_bounds = array<i64: 2, 1, 128>}, {transform_indices = @transform_3, window_bounds = array<i64: 1, 128>}, {transform_indices = @transform_4, window_bounds = array<i64: 1, 128>}, {transform_indices = @transform_5, window_bounds = array<i64: 1, 128, 128>}]} {
    %c0 = arith.constant 0 : index
    %c0_0 = arith.constant 0 : index
    %c0_1 = arith.constant 0 : index
    %0 = vector.load %arg4[%c0, %c0_0, %c0_1] : memref<2x1x128xf32, #tpu.memory_space<vmem>>, vector<2x1x128xf32>
    %cst = arith.constant dense<0.000000e+00> : vector<1x128xf32>
    %1 = vector.multi_reduction <add>, %0, %cst [0] : vector<2x1x128xf32> to vector<1x128xf32>
    %c0_2 = arith.constant 0 : index
    %c0_3 = arith.constant 0 : index
    %c0_4 = arith.constant 0 : index
    %2 = vector.load %arg5[%c0_2, %c0_3, %c0_4] : memref<2x1x128xf32, #tpu.memory_space<vmem>>, vector<2x1x128xf32>
    %cst_5 = arith.constant dense<0.000000e+00> : vector<1x128xf32>
    %3 = vector.multi_reduction <add>, %2, %cst_5 [0] : vector<2x1x128xf32> to vector<1x128xf32>
    %cst_6 = arith.constant 7.812500e-03 : f32
    %4 = vector.broadcast %cst_6 : f32 to vector<1x128xf32>
    %5 = arith.mulf %1, %4 : vector<1x128xf32>
    %cst_7 = arith.constant 7.812500e-03 : f32
    %6 = vector.broadcast %cst_7 : f32 to vector<1x128xf32>
    %7 = arith.mulf %3, %6 : vector<1x128xf32>
    %8 = arith.mulf %5, %5 : vector<1x128xf32>
    %9 = arith.subf %7, %8 : vector<1x128xf32>
    %cst_8 = arith.constant 0.000000e+00 : f32
    %10 = vector.broadcast %cst_8 : f32 to vector<1x128xf32>
    %11 = arith.maximumf %9, %10 : vector<1x128xf32>
    %c0_9 = arith.constant 0 : index
    %c0_10 = arith.constant 0 : index
    %12 = vector.load %arg6[%c0_9, %c0_10] : memref<1x128xf32, #tpu.memory_space<vmem>>, vector<1x128xf32>
    %cst_11 = arith.constant 9.99999974E-6 : f32
    %13 = vector.broadcast %cst_11 : f32 to vector<1x128xf32>
    %14 = arith.addf %11, %13 : vector<1x128xf32>
    %15 = math.rsqrt %14 : vector<1x128xf32>
    %16 = arith.mulf %12, %15 : vector<1x128xf32>
    %c0_12 = arith.constant 0 : index
    %c0_13 = arith.constant 0 : index
    %17 = vector.load %arg7[%c0_12, %c0_13] : memref<1x128xf32, #tpu.memory_space<vmem>>, vector<1x128xf32>
    %18 = arith.mulf %5, %16 : vector<1x128xf32>
    %19 = arith.subf %17, %18 : vector<1x128xf32>
    %c0_14 = arith.constant 0 : index
    %c0_15 = arith.constant 0 : index
    %c0_16 = arith.constant 0 : index
    %20 = vector.load %arg3[%c0_14, %c0_15, %c0_16] : memref<1x128x128xbf16, #tpu.memory_space<vmem>>, vector<1x128x128xbf16>
    %21 = vector.shape_cast %20 : vector<1x128x128xbf16> to vector<128x128xbf16>
    %22 = arith.extf %21 : vector<128x128xbf16> to vector<128x128xf32>
    %23 = vector.broadcast %16 : vector<1x128xf32> to vector<128x128xf32>
    %24 = arith.mulf %22, %23 : vector<128x128xf32>
    %25 = vector.broadcast %19 : vector<1x128xf32> to vector<128x128xf32>
    %26 = arith.addf %24, %25 : vector<128x128xf32>
    %cst_17 = arith.constant 0.000000e+00 : f32
    %27 = vector.broadcast %cst_17 : f32 to vector<128x128xf32>
    %28 = arith.cmpf oge, %26, %27 : vector<128x128xf32>
    %cst_18 = arith.constant 2.000000e-01 : f32
    %29 = vector.broadcast %cst_18 : f32 to vector<128x128xf32>
    %30 = arith.mulf %29, %26 : vector<128x128xf32>
    %31 = arith.select %28, %26, %30 : vector<128x128xi1>, vector<128x128xf32>
    %32 = tpu.transpose %31, [1, 0] : vector<128x128xf32> -> vector<128x128xf32>
    %33 = arith.truncf %32 : vector<128x128xf32> to vector<128x128xbf16>
    %c0_19 = arith.constant 0 : index
    %c0_20 = arith.constant 0 : index
    %c0_21 = arith.constant 0 : index
    %34 = vector.load %arg8[%c0_19, %c0_20, %c0_21] : memref<1x128x128xbf16, #tpu.memory_space<vmem>>, vector<1x128x128xbf16>
    %35 = vector.shape_cast %34 : vector<1x128x128xbf16> to vector<128x128xbf16>
    %36 = vector.shape_cast %33 : vector<128x128xbf16> to vector<1x128x128xbf16>
    tpu.vector_store %arg8[%c0_19, %c0_20, %c0_21], %36 {strides = array<i32>} : memref<1x128x128xbf16, #tpu.memory_space<vmem>>, vector<1x128x128xbf16>,
    return
  }
  func.func @transform_0(%arg0: i32, %arg1: i32, %arg2: i32) -> (i32, i32, i32) {
    %c0_i32 = arith.constant 0 : i32
    return %arg0, %arg2, %arg1 : i32, i32, i32
  }
  func.func @transform_1(%arg0: i32, %arg1: i32, %arg2: i32) -> (i32, i32, i32) {
    %c0_i32 = arith.constant 0 : i32
    %c0_i32_0 = arith.constant 0 : i32
    %c0_i32_1 = arith.constant 0 : i32
    return %c0_i32, %c0_i32_0, %arg1 : i32, i32, i32
  }
  func.func @transform_2(%arg0: i32, %arg1: i32, %arg2: i32) -> (i32, i32, i32) {
    %c0_i32 = arith.constant 0 : i32
    %c0_i32_0 = arith.constant 0 : i32
    %c0_i32_1 = arith.constant 0 : i32
    return %c0_i32, %c0_i32_0, %arg1 : i32, i32, i32
  }
  func.func @transform_3(%arg0: i32, %arg1: i32, %arg2: i32) -> (i32, i32) {
    %c0_i32 = arith.constant 0 : i32
    %c0_i32_0 = arith.constant 0 : i32
    return %c0_i32, %arg1 : i32, i32
  }
  func.func @transform_4(%arg0: i32, %arg1: i32, %arg2: i32) -> (i32, i32) {
    %c0_i32 = arith.constant 0 : i32
    %c0_i32_0 = arith.constant 0 : i32
    return %c0_i32, %arg1 : i32, i32
  }
  func.func @transform_5(%arg0: i32, %arg1: i32, %arg2: i32) -> (i32, i32, i32) {
    %c0_i32 = arith.constant 0 : i32
    return %arg0, %arg1, %arg2 : i32, i32, i32
  }
}

module attributes {stable_mosaic.version = 11 : i64} {
  func.func @_conv_stats_kernel_kres(%arg0: i32, %arg1: i32, %arg2: memref<1x128x128xbf16, #tpu.memory_space<vmem>>, %arg3: memref<128x128xbf16, #tpu.memory_space<vmem>>, %arg4: memref<1x128x128xbf16, #tpu.memory_space<vmem>>, %arg5: memref<1x1x128xf32, #tpu.memory_space<vmem>>, %arg6: memref<1x1x128xf32, #tpu.memory_space<vmem>>) attributes {dimension_semantics = [#tpu.dimension_semantics<parallel>, #tpu.dimension_semantics<parallel>], iteration_bounds = array<i64: 2, 1>, scalar_prefetch = 0 : i64, scratch_operands = 0 : i64, tpu.core_type = #tpu.core_type<tc>, window_params = [{transform_indices = @transform_0, window_bounds = array<i64: 1, 128, 128>}, {pipeline_mode = #tpu.pipeline_mode<synchronous>, transform_indices = @transform_1, window_bounds = array<i64: 128, 128>}, {transform_indices = @transform_2, window_bounds = array<i64: 1, 128, 128>}, {transform_indices = @transform_3, window_bounds = array<i64: 1, 1, 128>}, {transform_indices = @transform_4, window_bounds = array<i64: 1, 1, 128>}]} {
    %c0 = arith.constant 0 : index
    %c0_0 = arith.constant 0 : index
    %c0_1 = arith.constant 0 : index
    %0 = vector.load %arg2[%c0, %c0_0, %c0_1] : memref<1x128x128xbf16, #tpu.memory_space<vmem>>, vector<1x128x128xbf16>
    %1 = vector.shape_cast %0 : vector<1x128x128xbf16> to vector<128x128xbf16>
    %c0_2 = arith.constant 0 : index
    %c0_3 = arith.constant 0 : index
    %2 = vector.load %arg3[%c0_2, %c0_3] : memref<128x128xbf16, #tpu.memory_space<vmem>>, vector<128x128xbf16>
    %cst = arith.constant dense<0.000000e+00> : vector<128x128xf32>
    %3 = tpu.matmul %1, %2, %cst {dimension_numbers = #tpu.dot_dimension_numbers<[1], [0], [0], [1], [0, 0, 1, 1], [], []>} : vector<128x128xbf16>, vector<128x128xbf16>, vector<128x128xf32> -> vector<128x128xf32>
    %4 = arith.truncf %3 : vector<128x128xf32> to vector<128x128xbf16>
    %c0_4 = arith.constant 0 : index
    %c0_5 = arith.constant 0 : index
    %c0_6 = arith.constant 0 : index
    %5 = vector.load %arg4[%c0_4, %c0_5, %c0_6] : memref<1x128x128xbf16, #tpu.memory_space<vmem>>, vector<1x128x128xbf16>
    %6 = vector.shape_cast %5 : vector<1x128x128xbf16> to vector<128x128xbf16>
    %7 = vector.shape_cast %4 : vector<128x128xbf16> to vector<1x128x128xbf16>
    tpu.vector_store %arg4[%c0_4, %c0_5, %c0_6], %7 {strides = array<i32>} : memref<1x128x128xbf16, #tpu.memory_space<vmem>>, vector<1x128x128xbf16>,
    %cst_7 = arith.constant dense<0.000000e+00> : vector<128xf32>
    %8 = vector.multi_reduction <add>, %3, %cst_7 [0] : vector<128x128xf32> to vector<128xf32>
    %9 = vector.shape_cast %8 : vector<128xf32> to vector<1x128xf32>
    %10 = vector.shape_cast %9 : vector<1x128xf32> to vector<1x1x128xf32>
    %c0_8 = arith.constant 0 : index
    %c0_9 = arith.constant 0 : index
    %c0_10 = arith.constant 0 : index
    %11 = vector.load %arg5[%c0_8, %c0_9, %c0_10] : memref<1x1x128xf32, #tpu.memory_space<vmem>>, vector<1x1x128xf32>
    tpu.vector_store %arg5[%c0_8, %c0_9, %c0_10], %10 {strides = array<i32>} : memref<1x1x128xf32, #tpu.memory_space<vmem>>, vector<1x1x128xf32>,
    %12 = arith.mulf %3, %3 : vector<128x128xf32>
    %cst_11 = arith.constant dense<0.000000e+00> : vector<128xf32>
    %13 = vector.multi_reduction <add>, %12, %cst_11 [0] : vector<128x128xf32> to vector<128xf32>
    %14 = vector.shape_cast %13 : vector<128xf32> to vector<1x128xf32>
    %15 = vector.shape_cast %14 : vector<1x128xf32> to vector<1x1x128xf32>
    %c0_12 = arith.constant 0 : index
    %c0_13 = arith.constant 0 : index
    %c0_14 = arith.constant 0 : index
    %16 = vector.load %arg6[%c0_12, %c0_13, %c0_14] : memref<1x1x128xf32, #tpu.memory_space<vmem>>, vector<1x1x128xf32>
    tpu.vector_store %arg6[%c0_12, %c0_13, %c0_14], %15 {strides = array<i32>} : memref<1x1x128xf32, #tpu.memory_space<vmem>>, vector<1x1x128xf32>,
    return
  }
  func.func @transform_0(%arg0: i32, %arg1: i32) -> (i32, i32, i32) {
    %c0_i32 = arith.constant 0 : i32
    %c0_i32_0 = arith.constant 0 : i32
    return %arg0, %arg1, %c0_i32 : i32, i32, i32
  }
  func.func @transform_1(%arg0: i32, %arg1: i32) -> (i32, i32) {
    %c0_i32 = arith.constant 0 : i32
    %c0_i32_0 = arith.constant 0 : i32
    %c0_i32_1 = arith.constant 0 : i32
    return %c0_i32, %c0_i32_0 : i32, i32
  }
  func.func @transform_2(%arg0: i32, %arg1: i32) -> (i32, i32, i32) {
    %c0_i32 = arith.constant 0 : i32
    %c0_i32_0 = arith.constant 0 : i32
    return %arg0, %arg1, %c0_i32 : i32, i32, i32
  }
  func.func @transform_3(%arg0: i32, %arg1: i32) -> (i32, i32, i32) {
    %c1_i32 = arith.constant 1 : i32
    %0 = arith.muli %arg0, %c1_i32 : i32
    %1 = arith.addi %0, %arg1 : i32
    %c0_i32 = arith.constant 0 : i32
    %c0_i32_0 = arith.constant 0 : i32
    %c0_i32_1 = arith.constant 0 : i32
    return %1, %c0_i32, %c0_i32_0 : i32, i32, i32
  }
  func.func @transform_4(%arg0: i32, %arg1: i32) -> (i32, i32, i32) {
    %c1_i32 = arith.constant 1 : i32
    %0 = arith.muli %arg0, %c1_i32 : i32
    %1 = arith.addi %0, %arg1 : i32
    %c0_i32 = arith.constant 0 : i32
    %c0_i32_0 = arith.constant 0 : i32
    %c0_i32_1 = arith.constant 0 : i32
    return %1, %c0_i32, %c0_i32_0 : i32, i32, i32
  }
}

</mosaic_0001>

<llo_original>
// kernel: discriminator_cnn_block.3
$region0: #{discriminator_cnn_block.3}
  #allocation0 [shape = 'u32[]', space=smem, size = 0x4, offset = 0x4, fixed_abs, tag = 'smem constant byte address 0x4 - core index']
  #allocation1 [shape = 'u32[72,128]{1,0:T(1,128)}', space=vmem, size = 0x9000, scoped, tag = 'internal scratch']
  %s0 = inlined_call_operand.vmem [shape: bf16[2,128,128], index: 0, kind: input, shape index: {}]
  %s1 = inlined_call_operand.vmem [shape: f32[2,1,128], index: 1, kind: input, shape index: {}]
  %s2 = inlined_call_operand.vmem [shape: f32[2,1,128], index: 2, kind: input, shape index: {}]
  %s3 = inlined_call_operand.vmem [shape: f32[1,128], index: 3, kind: input, shape index: {}]
  %s4 = inlined_call_operand.vmem [shape: f32[1,128], index: 4, kind: input, shape index: {}]
  %s5 = inlined_call_operand.vmem [shape: bf16[2,128,128], index: 5, kind: output, shape index: {}]
  %s6 = sld [smem:[#allocation0]]
  $region53: #{discriminator_cnn_block.3} parent=0
    _
  %s8 = ssub.s32 1, %s6
  %s9 = scalar_select 0, %s8, %s6
  loop: start=0, step=1, limit=4
  $region2: #{discriminator_cnn_block.3} parent=0 // loop_pre_header
    _
  $region3: #{discriminator_cnn_block.3} parent=0 // loop_header
    %s11 = sphi 0, %s15
    %p12 = scmp.ge.s32.totalorder %s11, 4
    %s18 = sphi 0, %s37
    %s19 = sphi 0, %s33
    %s20 = sphi 0, %s29
    %s21 = sphi 0, %s18
    %s22 = sphi 0, %s19
    %s23 = sphi 0, %s20
    %s24 = sphi 0, %s21
    %s25 = sphi 0, %s22
    %s26 = sphi 0, %s23
    %s44 = sphi 0, %s46
    %s47 = sphi 0, %s44
    %s48 = sphi 0, %s47
    %s64 = sphi 0, %s48
    %s70 = sphi 0, %s72
    %s73 = sphi 0, %s70
    %s74 = sphi 0, %s73
    %s90 = sphi 0, %s74
    %s96 = sphi 0, %s98
    %s99 = sphi 0, %s96
    %s100 = sphi 0, %s99
    %s116 = sphi 0, %s100
    %s122 = sphi 0, %s124
    %s125 = sphi 0, %s122
    %s126 = sphi 0, %s125
    %s142 = sphi 0, %s126
    %s148 = sphi 0, %s150
    %s151 = sphi 0, %s148
    %s152 = sphi 0, %s151
    %s168 = sphi 0, %s152
    %s178 = sphi 0, %s180
    %s181 = sphi 0, %s178
    %s182 = sphi 0, %s181
    %s198 = sphi 0, %s182
  $region4: #{discriminator_cnn_block.3} parent=0 // loop_header_branch
    %14 = sbr.rel (%p12) target = $region8
  $region5: #{discriminator_cnn_block.3} parent=0 // loop_body
    %s16 = ssub.s32 %s11, 1
    %s17 = ssub.s32 %s11, 2
    %s27 = sadd.s32 1, %s20
    %p28 = scmp.ge.s32.totalorder %s27, 1
    %s29 = scalar_select %p28, 0, %s27
    %s30 = sadd.s32 1, %s19
    %s31 = scalar_select %p28, %s30, %s19
    %p32 = scmp.ge.s32.totalorder %s31, 1
    %s33 = scalar_select %p32, 0, %s31
    %s34 = sadd.s32 1, %s18
    %s35 = scalar_select %p32, %s34, %s18
    %p36 = scmp.ge.s32.totalorder %s35, 2
    %s37 = scalar_select %p36, 0, %s35
    %s38 = ssub.s32 %s18, %s37
    %s39 = ssub.s32 %s20, %s29
    %s40 = sor.u32 %s38, %s39
    %s41 = ssub.s32 %s19, %s33
    %s42 = sor.u32 %s40, %s41
    %p43 = scmp.eq.s32.totalorder %s42, 0
    %s45 = sadd.s32 %s44, 1
    %s46 = scalar_select %p43, %s44, %s45
    %p49 = pneg %p43
    %p50 = scmp.eq.s32.totalorder %s11, 1
    %p51 = por %p49, %p50
    %p52 = scmp.ne.s32.totalorder %s44, %s47
    %p53 = scmp.eq.s32.totalorder %s11, 0
    %p54 = por %p52, %p53
    %p55 = scmp.ne.s32.totalorder %s44, %s47
    %p56 = scmp.eq.s32.totalorder %s16, 1
    %p57 = por %p55, %p56
    %p58 = scmp.ne.s32.totalorder %s47, %s48
    %p59 = scmp.eq.s32.totalorder %s16, 0
    %p60 = por %p58, %p59
    %p61 = scmp.ne.s32.totalorder %s47, %s48
    %p62 = scmp.eq.s32.totalorder %s17, 1
    %p63 = por %p61, %p62
    %p65 = scmp.ne.s32.totalorder %s48, %s64
    %p66 = scmp.eq.s32.totalorder %s17, 0
    %p67 = por %p65, %p66
    %s68 = ssub.s32 %s19, %s33
    %p69 = scmp.eq.s32.totalorder %s68, 0
    %s71 = sadd.s32 %s70, 1
    %s72 = scalar_select %p69, %s70, %s71
    %p75 = pneg %p69
    %p76 = scmp.eq.s32.totalorder %s11, 1
    %p77 = por %p75, %p76
    %p78 = scmp.ne.s32.totalorder %s70, %s73
    %p79 = scmp.eq.s32.totalorder %s11, 0
    %p80 = por %p78, %p79
    %p81 = scmp.ne.s32.totalorder %s70, %s73
    %p82 = scmp.eq.s32.totalorder %s16, 1
    %p83 = por %p81, %p82
    %p84 = scmp.ne.s32.totalorder %s73, %s74
    %p85 = scmp.eq.s32.totalorder %s16, 0
    %p86 = por %p84, %p85
    %p87 = scmp.ne.s32.totalorder %s73, %s74
    %p88 = scmp.eq.s32.totalorder %s17, 1
    %p89 = por %p87, %p88
    %p91 = scmp.ne.s32.totalorder %s74, %s90
    %p92 = scmp.eq.s32.totalorder %s17, 0
    %p93 = por %p91, %p92
    %s94 = ssub.s32 %s19, %s33
    %p95 = scmp.eq.s32.totalorder %s94, 0
    %s97 = sadd.s32 %s96, 1
    %s98 = scalar_select %p95, %s96, %s97
    %p101 = pneg %p95
    %p102 = scmp.eq.s32.totalorder %s11, 1
    %p103 = por %p101, %p102
    %p104 = scmp.ne.s32.totalorder %s96, %s99
    %p105 = scmp.eq.s32.totalorder %s11, 0
    %p106 = por %p104, %p105
    %p107 = scmp.ne.s32.totalorder %s96, %s99
    %p108 = scmp.eq.s32.totalorder %s16, 1
    %p109 = por %p107, %p108
    %p110 = scmp.ne.s32.totalorder %s99, %s100
    %p111 = scmp.eq.s32.totalorder %s16, 0
    %p112 = por %p110, %p111
    %p113 = scmp.ne.s32.totalorder %s99, %s100
    %p114 = scmp.eq.s32.totalorder %s17, 1
    %p115 = por %p113, %p114
    %p117 = scmp.ne.s32.totalorder %s100, %s116
    %p118 = scmp.eq.s32.totalorder %s17, 0
    %p119 = por %p117, %p118
    %s120 = ssub.s32 %s19, %s33
    %p121 = scmp.eq.s32.totalorder %s120, 0
    %s123 = sadd.s32 %s122, 1
    %s124 = scalar_select %p121, %s122, %s123
    %p127 = pneg %p121
    %p128 = scmp.eq.s32.totalorder %s11, 1
    %p129 = por %p127, %p128
    %p130 = scmp.ne.s32.totalorder %s122, %s125
    %p131 = scmp.eq.s32.totalorder %s11, 0
    %p132 = por %p130, %p131
    %p133 = scmp.ne.s32.totalorder %s122, %s125
    %p134 = scmp.eq.s32.totalorder %s16, 1
    %p135 = por %p133, %p134
    %p136 = scmp.ne.s32.totalorder %s125, %s126
    %p137 = scmp.eq.s32.totalorder %s16, 0
    %p138 = por %p136, %p137
    %p139 = scmp.ne.s32.totalorder %s125, %s126
    %p140 = scmp.eq.s32.totalorder %s17, 1
    %p141 = por %p139, %p140
    %p143 = scmp.ne.s32.totalorder %s126, %s142
    %p144 = scmp.eq.s32.totalorder %s17, 0
    %p145 = por %p143, %p144
    %s146 = ssub.s32 %s19, %s33
    %p147 = scmp.eq.s32.totalorder %s146, 0
    %s149 = sadd.s32 %s148, 1
    %s150 = scalar_select %p147, %s148, %s149
    %p153 = pneg %p147
    %p154 = scmp.eq.s32.totalorder %s11, 1
    %p155 = por %p153, %p154
    %p156 = scmp.ne.s32.totalorder %s148, %s151
    %p157 = scmp.eq.s32.totalorder %s11, 0
    %p158 = por %p156, %p157
    %p159 = scmp.ne.s32.totalorder %s148, %s151
    %p160 = scmp.eq.s32.totalorder %s16, 1
    %p161 = por %p159, %p160
    %p162 = scmp.ne.s32.totalorder %s151, %s152
    %p163 = scmp.eq.s32.totalorder %s16, 0
    %p164 = por %p162, %p163
    %p165 = scmp.ne.s32.totalorder %s151, %s152
    %p166 = scmp.eq.s32.totalorder %s17, 1
    %p167 = por %p165, %p166
    %p169 = scmp.ne.s32.totalorder %s152, %s168
    %p170 = scmp.eq.s32.totalorder %s17, 0
    %p171 = por %p169, %p170
    %s172 = ssub.s32 %s18, %s37
    %s173 = ssub.s32 %s19, %s33
    %s174 = sor.u32 %s172, %s173
    %s175 = ssub.s32 %s20, %s29
    %s176 = sor.u32 %s174, %s175
    %p177 = scmp.eq.s32.totalorder %s176, 0
    %s179 = sadd.s32 %s178, 1
    %s180 = scalar_select %p177, %s178, %s179
    %p183 = pneg %p177
    %p184 = scmp.eq.s32.totalorder %s11, 1
    %p185 = por %p183, %p184
    %p186 = scmp.ne.s32.totalorder %s178, %s181
    %p187 = scmp.eq.s32.totalorder %s11, 0
    %p188 = por %p186, %p187
    %p189 = scmp.ne.s32.totalorder %s178, %s181
    %p190 = scmp.eq.s32.totalorder %s16, 1
    %p191 = por %p189, %p190
    %p192 = scmp.ne.s32.totalorder %s181, %s182
    %p193 = scmp.eq.s32.totalorder %s16, 0
    %p194 = por %p192, %p193
    %p195 = scmp.ne.s32.totalorder %s181, %s182
    %p196 = scmp.eq.s32.totalorder %s17, 1
    %p197 = por %p195, %p196
    %p199 = scmp.ne.s32.totalorder %s182, %s198
    %p200 = scmp.eq.s32.totalorder %s17, 0
    %p201 = por %p199, %p200
    %p202 = scmp.le.s32.totalorder 1, %s11
    %p203 = scmp.lt.s32.totalorder %s11, 3
    %p204 = pnand %p202, %p203
    %p205 = pneg %p204
    // Predicated region
    $region9: #{discriminator_cnn_block.3} parent=5 // pred_check
      _
    $region10: #{discriminator_cnn_block.3} parent=5 // pred_check_branch
      %207 = sbr.rel (%p204) target = $region12
    $region11: #{discriminator_cnn_block.3} parent=5 // pred_region
      %s208 = ssub.s32 %s11, 1
      // Predicated region
      $region13: #{discriminator_cnn_block.3} parent=11 // pred_check
        %p209 = pneg %p86
      $region14: #{discriminator_cnn_block.3} parent=11 // pred_check_branch
        %211 = sbr.rel (%p209) target = $region16
      $region15: #{discriminator_cnn_block.3} parent=11 // pred_region
        %p212 = scmp.lt.s32.totalorder %s22, 0
        %s213 = scalar_select %p212, %s22, 0
        %s214 = scalar_lea.vmem %s1, %s213
      $region16: #{discriminator_cnn_block.3} parent=11 // pred_fallthru
        _
      // Predicated region
      $region17: #{discriminator_cnn_block.3} parent=11 // pred_check
        %p215 = pneg %p112
      $region18: #{discriminator_cnn_block.3} parent=11 // pred_check_branch
        %217 = sbr.rel (%p215) target = $region20
      $region19: #{discriminator_cnn_block.3} parent=11 // pred_region
        %p218 = scmp.lt.s32.totalorder %s22, 0
        %s219 = scalar_select %p218, %s22, 0
        %s220 = scalar_lea.vmem %s2, %s219
      $region20: #{discriminator_cnn_block.3} parent=11 // pred_fallthru
        _
      // Predicated region
      $region21: #{discriminator_cnn_block.3} parent=11 // pred_check
        %p221 = pneg %p138
      $region22: #{discriminator_cnn_block.3} parent=11 // pred_check_branch
        %223 = sbr.rel (%p221) target = $region24
      $region23: #{discriminator_cnn_block.3} parent=11 // pred_region
        %p224 = scmp.lt.s32.totalorder %s22, 0
        %s225 = scalar_select %p224, %s22, 0
        %s226 = scalar_lea.vmem %s3, %s225
      $region24: #{discriminator_cnn_block.3} parent=11 // pred_fallthru
        _
      // Predicated region
      $region25: #{discriminator_cnn_block.3} parent=11 // pred_check
        %p227 = pneg %p164
      $region26: #{discriminator_cnn_block.3} parent=11 // pred_check_branch
        %229 = sbr.rel (%p227) target = $region28
      $region27: #{discriminator_cnn_block.3} parent=11 // pred_region
        %p230 = scmp.lt.s32.totalorder %s22, 0
        %s231 = scalar_select %p230, %s22, 0
        %s232 = scalar_lea.vmem %s4, %s231
      $region28: #{discriminator_cnn_block.3} parent=11 // pred_fallthru
        _
    $region12: #{discriminator_cnn_block.3} parent=5 // pred_fallthru
      _
    %p233 = scmp.lt.s32.totalorder %s11, 2
    // Predicated region
    $region29: #{discriminator_cnn_block.3} parent=5 // pred_check
      %p234 = pneg %p233
    $region30: #{discriminator_cnn_block.3} parent=5 // pred_check_branch
      %236 = sbr.rel (%p234) target = $region32
    $region31: #{discriminator_cnn_block.3} parent=5 // pred_region
      // Predicated region
      $region33: #{discriminator_cnn_block.3} parent=31 // pred_check
        %p237 = pneg %p54
      $region34: #{discriminator_cnn_block.3} parent=31 // pred_check_branch
        %239 = sbr.rel (%p237) target = $region36
      $region35: #{discriminator_cnn_block.3} parent=31 // pred_region
        %s240 = smul.u32 16, %s20
        %p241 = scmp.lt.s32.totalorder %s18, 1
        %s242 = scalar_select %p241, %s18, 1
        %p243 = scmp.lt.s32.totalorder %s240, 15
        %s244 = scalar_select %p243, %s240, 15
        %p245 = scmp.lt.s32.totalorder %s19, 0
        %s246 = scalar_select %p245, %s19, 0
        %s247 = sadd.s32 %s246, %s244
        %s248 = smul.addr %s242, 16
        %s249 = sadd.s32 %s247, %s248
        %s250 = smul.addr %s249, 4
        %s251 = scalar_lea.vmem %s0, %s250
        %s252 = smul.u32 16, %s20
      $region36: #{discriminator_cnn_block.3} parent=31 // pred_fallthru
        _
    $region32: #{discriminator_cnn_block.3} parent=5 // pred_fallthru
      _
    %p253 = scmp.le.s32.totalorder 1, %s11
    %p254 = scmp.lt.s32.totalorder %s11, 3
    %p255 = pnand %p253, %p254
    %p256 = pneg %p255
    // Predicated region
    $region37: #{discriminator_cnn_block.3} parent=5 // pred_check
      _
    $region38: #{discriminator_cnn_block.3} parent=5 // pred_check_branch
      %258 = sbr.rel (%p255) target = $region40
    $region39: #{discriminator_cnn_block.3} parent=5 // pred_region
      %s259 = ssub.s32 %s11, 1
      %s260 = smul.u32 16, %s23
      %p261 = scmp.lt.s32.totalorder %s21, 1
      %s262 = scalar_select %p261, %s21, 1
      %p263 = scmp.lt.s32.totalorder %s260, 15
      %s264 = scalar_select %p263, %s260, 15
      %p265 = scmp.lt.s32.totalorder %s22, 0
      %s266 = scalar_select %p265, %s22, 0
      %s267 = sadd.s32 %s266, %s264
      %s268 = smul.addr %s262, 16
      %s269 = sadd.s32 %s267, %s268
      %s270 = smul.addr %s269, 4
      %s271 = scalar_lea.vmem %s0, %s270
      %p272 = pneg %p60
      %p273 = pneg %p57
      %p274 = scmp.lt.s32.totalorder %s22, 0
      %s275 = scalar_select %p274, %s22, 0
      %s276 = scalar_lea.vmem %s1, %s275
      %p277 = pneg %p86
      %p278 = pneg %p83
      %p279 = scmp.lt.s32.totalorder %s22, 0
      %s280 = scalar_select %p279, %s22, 0
      %s281 = scalar_lea.vmem %s2, %s280
      %p282 = pneg %p112
      %p283 = pneg %p109
      %p284 = scmp.lt.s32.totalorder %s22, 0
      %s285 = scalar_select %p284, %s22, 0
      %s286 = scalar_lea.vmem %s3, %s285
      %p287 = pneg %p138
      %p288 = pneg %p135
      %p289 = scmp.lt.s32.totalorder %s22, 0
      %s290 = scalar_select %p289, %s22, 0
      %s291 = scalar_lea.vmem %s4, %s290
      %p292 = pneg %p164
      %p293 = pneg %p161
      %p294 = pneg %p194
      %p295 = pneg %p191
      %s296 = smul.u32 16, %s22
      %p297 = scmp.lt.s32.totalorder %s21, 1
      %s298 = scalar_select %p297, %s21, 1
      %p299 = scmp.lt.s32.totalorder %s296, 15
      %s300 = scalar_select %p299, %s296, 15
      %p301 = scmp.lt.s32.totalorder %s23, 0
      %s302 = scalar_select %p301, %s23, 0
      %s303 = sadd.s32 %s302, %s300
      %s304 = smul.addr %s298, 16
      %s305 = sadd.s32 %s303, %s304
      %s306 = smul.addr %s305, 4
      %s307 = scalar_lea.vmem %s5, %s306
      %s308 = smul.u32 16, %s23
      %p309 = scmp.lt.s32.totalorder %s21, 1
      %s310 = scalar_select %p309, %s21, 1
      %p311 = scmp.lt.s32.totalorder %s308, 15
      %s312 = scalar_select %p311, %s308, 15
      %p313 = scmp.lt.s32.totalorder %s22, 0
      %s314 = scalar_select %p313, %s22, 0
      %s315 = sadd.s32 %s314, %s312
      %s316 = smul.addr %s310, 16
      %s317 = sadd.s32 %s315, %s316
      %s318 = smul.addr %s317, 4
      %s319 = scalar_lea.vmem %s0, %s318
      %s320 = smul.u32 16, %s23
      %p321 = scmp.lt.s32.totalorder %s22, 0
      %s322 = scalar_select %p321, %s22, 0
      %s323 = scalar_lea.vmem %s1, %s322
      %p324 = scmp.lt.s32.totalorder %s22, 0
      %s325 = scalar_select %p324, %s22, 0
      %s326 = scalar_lea.vmem %s2, %s325
      %p327 = scmp.lt.s32.totalorder %s22, 0
      %s328 = scalar_select %p327, %s22, 0
      %s329 = scalar_lea.vmem %s3, %s328
      %p330 = scmp.lt.s32.totalorder %s22, 0
      %s331 = scalar_select %p330, %s22, 0
      %s332 = scalar_lea.vmem %s4, %s331
      %s333 = smul.u32 16, %s22
      %p334 = scmp.lt.s32.totalorder %s21, 1
      %s335 = scalar_select %p334, %s21, 1
      %p336 = scmp.lt.s32.totalorder %s333, 15
      %s337 = scalar_select %p336, %s333, 15
      %p338 = scmp.lt.s32.totalorder %s23, 0
      %s339 = scalar_select %p338, %s23, 0
      %s340 = sadd.s32 %s339, %s337
      %s341 = smul.addr %s335, 16
      %s342 = sadd.s32 %s340, %s341
      %s343 = smul.addr %s342, 4
      %s344 = scalar_lea.vmem %s5, %s343
      %s345 = smul.u32 16, %s22
      %v346 = vld [vmem:[%s323] sm:$0x1]
      %v347 = vld [vmem:[%s323 + $0x1] sm:$0x1]
      %vm348 = vcmask 1040384
      %v349 = vsel %vm348, %v346, 0.0
      %v350 = vsel %vm348, %v347, 0.0
      %v351 = vadd.f32 %v349, %v350
      %v352 = vld [vmem:[%s326] sm:$0x1]
      %v353 = vld [vmem:[%s326 + $0x1] sm:$0x1]
      %v354 = vsel %vm348, %v352, 0.0
      %v355 = vsel %vm348, %v353, 0.0
      %v356 = vadd.f32 %v354, %v355
      %v357 = vmul.f32 %v351, 0.0078125
      %v358 = vmul.f32 %v356, 0.0078125
      %v359 = vmul.f32 %v357, %v357
      %v360 = vsub.f32 %v358, %v359
      %v361 = vmax.f32 %v360, 0.0
      %v362 = vld [vmem:[%s329] sm:$0x1]
      %v363 = vadd.f32 %v361, 1e-05
      %v364 = vrsqrt.pop %v363
      %v365 = vmul.f32 %v364, %v363
      %v366 = vmul.f32 %v365, %v364
      %v367 = vmul.f32 0.5, %v366
      %v368 = vsub.f32 1.5, %v367
      %v369 = vmul.f32 %v364, %v368
      %vm370 = vweird.f32 %v363
      %vm371 = vweird.f32 %v364
      %vm372 = vmor %vm370, %vm371
      %v373 = vsel %vm372, %v364, %v369
      %v374 = vmul.f32 %v362, %v373
      %v375 = vld [vmem:[%s332] sm:$0x1]
      %v376 = vmul.f32 %v357, %v374
      %v377 = vsub.f32 %v375, %v376
      %v378 = vld [vmem:[%s319] sm:$0xf]
      %v379 = vld [vmem:[%s319 + $0x4] sm:$0xf]
      %v380 = vld [vmem:[%s319 + $0x8] sm:$0xf]
      %v381 = vld [vmem:[%s319 + $0xc] sm:$0xf]
      %v382 = vld [vmem:[%s319 + $0x10] sm:$0xf]
      %v383 = vld [vmem:[%s319 + $0x14] sm:$0xf]
      %v384 = vld [vmem:[%s319 + $0x18] sm:$0xf]
      %v385 = vld [vmem:[%s319 + $0x1c] sm:$0xf]
      %v386 = vld [vmem:[%s319 + $0x20] sm:$0xf]
      %v387 = vld [vmem:[%s319 + $0x24] sm:$0xf]
      %v388 = vld [vmem:[%s319 + $0x28] sm:$0xf]
      %v389 = vld [vmem:[%s319 + $0x2c] sm:$0xf]
      %v390 = vld [vmem:[%s319 + $0x30] sm:$0xf]
      %v391 = vld [vmem:[%s319 + $0x34] sm:$0xf]
      %v392 = vld [vmem:[%s319 + $0x38] sm:$0xf]
      %v393 = vld [vmem:[%s319 + $0x3c] sm:$0xf]
      %v394 = vunpack.c.l.bf16 %v378
      %v395 = vunpack.c.l.bf16 %v379
      %v396 = vunpack.c.l.bf16 %v380
      %v397 = vunpack.c.l.bf16 %v381
      %v398 = vunpack.c.l.bf16 %v382
      %v399 = vunpack.c.l.bf16 %v383
      %v400 = vunpack.c.l.bf16 %v384
      %v401 = vunpack.c.l.bf16 %v385
      %v402 = vunpack.c.l.bf16 %v386
      %v403 = vunpack.c.l.bf16 %v387
      %v404 = vunpack.c.l.bf16 %v388
      %v405 = vunpack.c.l.bf16 %v389
      %v406 = vunpack.c.l.bf16 %v390
      %v407 = vunpack.c.l.bf16 %v391
      %v408 = vunpack.c.l.bf16 %v392
      %v409 = vunpack.c.l.bf16 %v393
      %v411 = vperm.slane %v374, 0
      %v413 = vmul.f32 %v394, %v411
      %v414 = vmul.f32 %v395, %v411
      %v415 = vmul.f32 %v396, %v411
      %v416 = vmul.f32 %v397, %v411
      %v417 = vmul.f32 %v398, %v411
      %v418 = vmul.f32 %v399, %v411
      %v419 = vmul.f32 %v400, %v411
      %v420 = vmul.f32 %v401, %v411
      %v421 = vmul.f32 %v402, %v411
      %v422 = vmul.f32 %v403, %v411
      %v423 = vmul.f32 %v404, %v411
      %v424 = vmul.f32 %v405, %v411
      %v425 = vmul.f32 %v406, %v411
      %v426 = vmul.f32 %v407, %v411
      %v427 = vmul.f32 %v408, %v411
      %v428 = vmul.f32 %v409, %v411
      %v430 = vperm.slane %v377, 0
      %v432 = vadd.f32 %v413, %v430
      %v433 = vadd.f32 %v414, %v430
      %v434 = vadd.f32 %v415, %v430
      %v435 = vadd.f32 %v416, %v430
      %v436 = vadd.f32 %v417, %v430
      %v437 = vadd.f32 %v418, %v430
      %v438 = vadd.f32 %v419, %v430
      %v439 = vadd.f32 %v420, %v430
      %v440 = vadd.f32 %v421, %v430
      %v441 = vadd.f32 %v422, %v430
      %v442 = vadd.f32 %v423, %v430
      %v443 = vadd.f32 %v424, %v430
      %v444 = vadd.f32 %v425, %v430
      %v445 = vadd.f32 %v426, %v430
      %v446 = vadd.f32 %v427, %v430
      %v447 = vadd.f32 %v428, %v430
      %vm448 = vcmp.ge.f32.partialorder %v432, 0.0
      %vm449 = vcmp.ge.f32.partialorder %v433, 0.0
      %vm450 = vcmp.ge.f32.partialorder %v434, 0.0
      %vm451 = vcmp.ge.f32.partialorder %v435, 0.0
      %vm452 = vcmp.ge.f32.partialorder %v436, 0.0
      %vm453 = vcmp.ge.f32.partialorder %v437, 0.0
      %vm454 = vcmp.ge.f32.partialorder %v438, 0.0
      %vm455 = vcmp.ge.f32.partialorder %v439, 0.0
      %vm456 = vcmp.ge.f32.partialorder %v440, 0.0
      %vm457 = vcmp.ge.f32.partialorder %v441, 0.0
      %vm458 = vcmp.ge.f32.partialorder %v442, 0.0
      %vm459 = vcmp.ge.f32.partialorder %v443, 0.0
      %vm460 = vcmp.ge.f32.partialorder %v444, 0.0
      %vm461 = vcmp.ge.f32.partialorder %v445, 0.0
      %vm462 = vcmp.ge.f32.partialorder %v446, 0.0
      %vm463 = vcmp.ge.f32.partialorder %v447, 0.0
      %v464 = vmul.f32 %v432, 0.2
      %v465 = vmul.f32 %v433, 0.2
      %v466 = vmul.f32 %v434, 0.2
      %v467 = vmul.f32 %v435, 0.2
      %v468 = vmul.f32 %v436, 0.2
      %v469 = vmul.f32 %v437, 0.2
      %v470 = vmul.f32 %v438, 0.2
      %v471 = vmul.f32 %v439, 0.2
      %v472 = vmul.f32 %v440, 0.2
      %v473 = vmul.f32 %v441, 0.2
      %v474 = vmul.f32 %v442, 0.2
      %v475 = vmul.f32 %v443, 0.2
      %v476 = vmul.f32 %v444, 0.2
      %v477 = vmul.f32 %v445, 0.2
      %v478 = vmul.f32 %v446, 0.2
      %v479 = vmul.f32 %v447, 0.2
      %v480 = vsel %vm448, %v432, %v464
      %v481 = vsel %vm449, %v433, %v465
      %v482 = vsel %vm450, %v434, %v466
      %v483 = vsel %vm451, %v435, %v467
      %v484 = vsel %vm452, %v436, %v468
      %v485 = vsel %vm453, %v437, %v469
      %v486 = vsel %vm454, %v438, %v470
      %v487 = vsel %vm455, %v439, %v471
      %v488 = vsel %vm456, %v440, %v472
      %v489 = vsel %vm457, %v441, %v473
      %v490 = vsel %vm458, %v442, %v474
      %v491 = vsel %vm459, %v443, %v475
      %v492 = vsel %vm460, %v444, %v476
      %v493 = vsel %vm461, %v445, %v477
      %v494 = vsel %vm462, %v446, %v478
      %v495 = vsel %vm463, %v447, %v479
      %496 = vxpose.xlu0.b32.start [1/16] %v480, 128
      %497 = vxpose.xlu0.b32.cont [2/16] %v481, 128
      %498 = vxpose.xlu0.b32.cont [3/16] %v482, 128
      %499 = vxpose.xlu0.b32.cont [4/16] %v483, 128
      %500 = vxpose.xlu0.b32.cont [5/16] %v484, 128
      %501 = vxpose.xlu0.b32.cont [6/16] %v485, 128
      %502 = vxpose.xlu0.b32.cont [7/16] %v486, 128
      %503 = vxpose.xlu0.b32.cont [8/16] %v487, 128
      %504 = vxpose.xlu0.b32.cont [9/16] %v488, 128
      %505 = vxpose.xlu0.b32.cont [10/16] %v489, 128
      %506 = vxpose.xlu0.b32.cont [11/16] %v490, 128
      %507 = vxpose.xlu0.b32.cont [12/16] %v491, 128
      %508 = vxpose.xlu0.b32.cont [13/16] %v492, 128
      %509 = vxpose.xlu0.b32.cont [14/16] %v493, 128
      %510 = vxpose.xlu0.b32.cont [15/16] %v494, 128
      %511 = vxpose.xlu0.b32.end [16/16] %v495, 128
      %v512 = vpop.trf.xlu0
      %v513 = vpop.trf.xlu0
      %v514 = vpop.trf.xlu0
      %v515 = vpop.trf.xlu0
      %v516 = vpop.trf.xlu0
      %v517 = vpop.trf.xlu0
      %v518 = vpop.trf.xlu0
      %v519 = vpop.trf.xlu0
      %v520 = vpop.trf.xlu0
      %v521 = vpop.trf.xlu0
      %v522 = vpop.trf.xlu0
      %v523 = vpop.trf.xlu0
      %v524 = vpop.trf.xlu0
      %v525 = vpop.trf.xlu0
      %v526 = vpop.trf.xlu0
      %v527 = vpop.trf.xlu0
      %v528 = vpack.c.bf16 %v512, %v512
      %v529 = vpack.c.bf16 %v513, %v513
      %v530 = vpack.c.bf16 %v514, %v514
      %v531 = vpack.c.bf16 %v515, %v515
      %v532 = vpack.c.bf16 %v516, %v516
      %v533 = vpack.c.bf16 %v517, %v517
      %v534 = vpack.c.bf16 %v518, %v518
      %v535 = vpack.c.bf16 %v519, %v519
      %v536 = vpack.c.bf16 %v520, %v520
      %v537 = vpack.c.bf16 %v521, %v521
      %v538 = vpack.c.bf16 %v522, %v522
      %v539 = vpack.c.bf16 %v523, %v523
      %v540 = vpack.c.bf16 %v524, %v524
      %v541 = vpack.c.bf16 %v525, %v525
      %v542 = vpack.c.bf16 %v526, %v526
      %v543 = vpack.c.bf16 %v527, %v527
      %544 = vst [vmem:[%s344] sm:$0xf] %v528
      %545 = vst [vmem:[%s344 + $0x4] sm:$0xf] %v529
      %546 = vst [vmem:[%s344 + $0x8] sm:$0xf] %v530
      %547 = vst [vmem:[%s344 + $0xc] sm:$0xf] %v531
      %548 = vst [vmem:[%s344 + $0x10] sm:$0xf] %v532
      %549 = vst [vmem:[%s344 + $0x14] sm:$0xf] %v533
      %550 = vst [vmem:[%s344 + $0x18] sm:$0xf] %v534
      %551 = vst [vmem:[%s344 + $0x1c] sm:$0xf] %v535
      %552 = vst [vmem:[%s344 + $0x20] sm:$0xf] %v536
      %553 = vst [vmem:[%s344 + $0x24] sm:$0xf] %v537
      %554 = vst [vmem:[%s344 + $0x28] sm:$0xf] %v538
      %555 = vst [vmem:[%s344 + $0x2c] sm:$0xf] %v539
      %556 = vst [vmem:[%s344 + $0x30] sm:$0xf] %v540
      %557 = vst [vmem:[%s344 + $0x34] sm:$0xf] %v541
      %558 = vst [vmem:[%s344 + $0x38] sm:$0xf] %v542
      %559 = vst [vmem:[%s344 + $0x3c] sm:$0xf] %v543
      %s560 = smul.u32 16, %s22
      %p561 = scmp.lt.s32.totalorder %s21, 1
      %s562 = scalar_select %p561, %s21, 1
      %p563 = scmp.lt.s32.totalorder %s560, 15
      %s564 = scalar_select %p563, %s560, 15
      %p565 = scmp.lt.s32.totalorder %s23, 0
      %s566 = scalar_select %p565, %s23, 0
      %s567 = sadd.s32 %s566, %s564
      %s568 = smul.addr %s562, 16
      %s569 = sadd.s32 %s567, %s568
      %s570 = smul.addr %s569, 4
      %s571 = scalar_lea.vmem %s5, %s570
      // Predicated region
      $region41: #{discriminator_cnn_block.3} parent=39 // pred_check
        %p572 = pneg %p191
      $region42: #{discriminator_cnn_block.3} parent=39 // pred_check_branch
        %574 = sbr.rel (%p572) target = $region44
      $region43: #{discriminator_cnn_block.3} parent=39 // pred_region
        %s575 = smul.u32 16, %s22
      $region44: #{discriminator_cnn_block.3} parent=39 // pred_fallthru
        _
    $region40: #{discriminator_cnn_block.3} parent=5 // pred_fallthru
      _
    %p576 = scmp.le.s32.totalorder 2, %s11
    // Predicated region
    $region45: #{discriminator_cnn_block.3} parent=5 // pred_check
      %p577 = pneg %p576
    $region46: #{discriminator_cnn_block.3} parent=5 // pred_check_branch
      %579 = sbr.rel (%p577) target = $region48
    $region47: #{discriminator_cnn_block.3} parent=5 // pred_region
      %s580 = ssub.s32 %s11, 2
      // Predicated region
      $region49: #{discriminator_cnn_block.3} parent=47 // pred_check
        %p581 = pneg %p197
      $region50: #{discriminator_cnn_block.3} parent=47 // pred_check_branch
        %583 = sbr.rel (%p581) target = $region52
      $region51: #{discriminator_cnn_block.3} parent=47 // pred_region
        %s584 = smul.u32 16, %s25
        %p585 = scmp.lt.s32.totalorder %s24, 1
        %s586 = scalar_select %p585, %s24, 1
        %p587 = scmp.lt.s32.totalorder %s584, 15
        %s588 = scalar_select %p587, %s584, 15
        %p589 = scmp.lt.s32.totalorder %s26, 0
        %s590 = scalar_select %p589, %s26, 0
        %s591 = sadd.s32 %s590, %s588
        %s592 = smul.addr %s586, 16
        %s593 = sadd.s32 %s591, %s592
        %s594 = smul.addr %s593, 4
        %s595 = scalar_lea.vmem %s5, %s594
      $region52: #{discriminator_cnn_block.3} parent=47 // pred_fallthru
        _
    $region48: #{discriminator_cnn_block.3} parent=5 // pred_fallthru
      _
  $region6: #{discriminator_cnn_block.3} parent=0 // loop_footer
    %s15 = sadd.s32 1, %s11
  $region7: #{discriminator_cnn_block.3} parent=0 // loop_footer_branch
    %10 = sbr.rel target = $region3
  $region8: #{discriminator_cnn_block.3} parent=0 // loop_exit
    _

// kernel: discriminator_cnn_block.2
$region0: #{discriminator_cnn_block.2}
  #allocation0 [shape = 'u32[]', space=smem, size = 0x4, offset = 0x4, fixed_abs, tag = 'smem constant byte address 0x4 - core index']
  #allocation1 [shape = 'u32[72,128]{1,0:T(1,128)}', space=vmem, size = 0x9000, scoped, tag = 'internal scratch']
  %s0 = inlined_call_operand.vmem [shape: bf16[2,128,128], index: 0, kind: input, shape index: {}]
  %s1 = inlined_call_operand.vmem [shape: bf16[128,128], index: 1, kind: input, shape index: {}]
  %s2 = inlined_call_operand.vmem [shape: bf16[2,128,128], index: 2, kind: output, shape index: {0}]
  %s3 = inlined_call_operand.vmem [shape: f32[2,1,128], index: 3, kind: output, shape index: {1}]
  %s4 = inlined_call_operand.vmem [shape: f32[2,1,128], index: 4, kind: output, shape index: {2}]
  %5 = xla_tuple %s2, %s3, %s4
  %s6 = sld [smem:[#allocation0]]
  $region57: #{discriminator_cnn_block.2} parent=0
    _
  %s8 = ssub.s32 1, %s6
  %s9 = scalar_select 0, %s8, %s6
  loop: start=0, step=1, limit=4
  $region2: #{discriminator_cnn_block.2} parent=0 // loop_pre_header
    _
  $region3: #{discriminator_cnn_block.2} parent=0 // loop_header
    %s11 = sphi 0, %s15
    %p12 = scmp.ge.s32.totalorder %s11, 4
    %s18 = sphi 0, %s30
    %s19 = sphi 0, %s26
    %s20 = sphi 0, %s18
    %s21 = sphi 0, %s19
    %s22 = sphi 0, %s20
    %s23 = sphi 0, %s21
    %s35 = sphi 0, %s37
    %s38 = sphi 0, %s35
    %s39 = sphi 0, %s38
    %s55 = sphi 0, %s39
    %s59 = sphi 0, %s59
    %s61 = sphi 0, %s59
    %s62 = sphi 0, %s61
    %s76 = sphi 0, %s62
    %s84 = sphi 0, %s86
    %s87 = sphi 0, %s84
    %s88 = sphi 0, %s87
    %s104 = sphi 0, %s88
    %s112 = sphi 0, %s114
    %s115 = sphi 0, %s112
    %s116 = sphi 0, %s115
    %s132 = sphi 0, %s116
    %s140 = sphi 0, %s142
    %s143 = sphi 0, %s140
    %s144 = sphi 0, %s143
    %s160 = sphi 0, %s144
  $region4: #{discriminator_cnn_block.2} parent=0 // loop_header_branch
    %14 = sbr.rel (%p12) target = $region8
  $region5: #{discriminator_cnn_block.2} parent=0 // loop_body
    %s16 = ssub.s32 %s11, 1
    %s17 = ssub.s32 %s11, 2
    %s24 = sadd.s32 1, %s19
    %p25 = scmp.ge.s32.totalorder %s24, 1
    %s26 = scalar_select %p25, 0, %s24
    %s27 = sadd.s32 1, %s18
    %s28 = scalar_select %p25, %s27, %s18
    %p29 = scmp.ge.s32.totalorder %s28, 2
    %s30 = scalar_select %p29, 0, %s28
    %s31 = ssub.s32 %s18, %s30
    %s32 = ssub.s32 %s19, %s26
    %s33 = sor.u32 %s31, %s32
    %p34 = scmp.eq.s32.totalorder %s33, 0
    %s36 = sadd.s32 %s35, 1
    %s37 = scalar_select %p34, %s35, %s36
    %p40 = pneg %p34
    %p41 = scmp.eq.s32.totalorder %s11, 1
    %p42 = por %p40, %p41
    %p43 = scmp.ne.s32.totalorder %s35, %s38
    %p44 = scmp.eq.s32.totalorder %s11, 0
    %p45 = por %p43, %p44
    %p46 = scmp.ne.s32.totalorder %s35, %s38
    %p47 = scmp.eq.s32.totalorder %s16, 1
    %p48 = por %p46, %p47
    %p49 = scmp.ne.s32.totalorder %s38, %s39
    %p50 = scmp.eq.s32.totalorder %s16, 0
    %p51 = por %p49, %p50
    %p52 = scmp.ne.s32.totalorder %s38, %s39
    %p53 = scmp.eq.s32.totalorder %s17, 1
    %p54 = por %p52, %p53
    %p56 = scmp.ne.s32.totalorder %s39, %s55
    %p57 = scmp.eq.s32.totalorder %s17, 0
    %p58 = por %p56, %p57
    %s60 = sadd.s32 %s59, 1
    %p63 = scmp.eq.s32.totalorder %s11, 1
    %p64 = scmp.ne.s32.totalorder %s59, %s61
    %p65 = scmp.eq.s32.totalorder %s11, 0
    %p66 = por %p64, %p65
    %p67 = scmp.ne.s32.totalorder %s59, %s61
    %p68 = scmp.eq.s32.totalorder %s16, 1
    %p69 = por %p67, %p68
    %p70 = scmp.ne.s32.totalorder %s61, %s62
    %p71 = scmp.eq.s32.totalorder %s16, 0
    %p72 = por %p70, %p71
    %p73 = scmp.ne.s32.totalorder %s61, %s62
    %p74 = scmp.eq.s32.totalorder %s17, 1
    %p75 = por %p73, %p74
    %p77 = scmp.ne.s32.totalorder %s62, %s76
    %p78 = scmp.eq.s32.totalorder %s17, 0
    %p79 = por %p77, %p78
    %s80 = ssub.s32 %s18, %s30
    %s81 = ssub.s32 %s19, %s26
    %s82 = sor.u32 %s80, %s81
    %p83 = scmp.eq.s32.totalorder %s82, 0
    %s85 = sadd.s32 %s84, 1
    %s86 = scalar_select %p83, %s84, %s85
    %p89 = pneg %p83
    %p90 = scmp.eq.s32.totalorder %s11, 1
    %p91 = por %p89, %p90
    %p92 = scmp.ne.s32.totalorder %s84, %s87
    %p93 = scmp.eq.s32.totalorder %s11, 0
    %p94 = por %p92, %p93
    %p95 = scmp.ne.s32.totalorder %s84, %s87
    %p96 = scmp.eq.s32.totalorder %s16, 1
    %p97 = por %p95, %p96
    %p98 = scmp.ne.s32.totalorder %s87, %s88
    %p99 = scmp.eq.s32.totalorder %s16, 0
    %p100 = por %p98, %p99
    %p101 = scmp.ne.s32.totalorder %s87, %s88
    %p102 = scmp.eq.s32.totalorder %s17, 1
    %p103 = por %p101, %p102
    %p105 = scmp.ne.s32.totalorder %s88, %s104
    %p106 = scmp.eq.s32.totalorder %s17, 0
    %p107 = por %p105, %p106
    %s108 = sadd.s32 %s18, %s19
    %s109 = sadd.s32 %s30, %s26
    %s110 = ssub.s32 %s108, %s109
    %p111 = scmp.eq.s32.totalorder %s110, 0
    %s113 = sadd.s32 %s112, 1
    %s114 = scalar_select %p111, %s112, %s113
    %p117 = pneg %p111
    %p118 = scmp.eq.s32.totalorder %s11, 1
    %p119 = por %p117, %p118
    %p120 = scmp.ne.s32.totalorder %s112, %s115
    %p121 = scmp.eq.s32.totalorder %s11, 0
    %p122 = por %p120, %p121
    %p123 = scmp.ne.s32.totalorder %s112, %s115
    %p124 = scmp.eq.s32.totalorder %s16, 1
    %p125 = por %p123, %p124
    %p126 = scmp.ne.s32.totalorder %s115, %s116
    %p127 = scmp.eq.s32.totalorder %s16, 0
    %p128 = por %p126, %p127
    %p129 = scmp.ne.s32.totalorder %s115, %s116
    %p130 = scmp.eq.s32.totalorder %s17, 1
    %p131 = por %p129, %p130
    %p133 = scmp.ne.s32.totalorder %s116, %s132
    %p134 = scmp.eq.s32.totalorder %s17, 0
    %p135 = por %p133, %p134
    %s136 = sadd.s32 %s18, %s19
    %s137 = sadd.s32 %s30, %s26
    %s138 = ssub.s32 %s136, %s137
    %p139 = scmp.eq.s32.totalorder %s138, 0
    %s141 = sadd.s32 %s140, 1
    %s142 = scalar_select %p139, %s140, %s141
    %p145 = pneg %p139
    %p146 = scmp.eq.s32.totalorder %s11, 1
    %p147 = por %p145, %p146
    %p148 = scmp.ne.s32.totalorder %s140, %s143
    %p149 = scmp.eq.s32.totalorder %s11, 0
    %p150 = por %p148, %p149
    %p151 = scmp.ne.s32.totalorder %s140, %s143
    %p152 = scmp.eq.s32.totalorder %s16, 1
    %p153 = por %p151, %p152
    %p154 = scmp.ne.s32.totalorder %s143, %s144
    %p155 = scmp.eq.s32.totalorder %s16, 0
    %p156 = por %p154, %p155
    %p157 = scmp.ne.s32.totalorder %s143, %s144
    %p158 = scmp.eq.s32.totalorder %s17, 1
    %p159 = por %p157, %p158
    %p161 = scmp.ne.s32.totalorder %s144, %s160
    %p162 = scmp.eq.s32.totalorder %s17, 0
    %p163 = por %p161, %p162
    %p164 = scmp.le.s32.totalorder 1, %s11
    %p165 = scmp.lt.s32.totalorder %s11, 3
    %p166 = pnand %p164, %p165
    %p167 = pneg %p166
    // Predicated region
    $region9: #{discriminator_cnn_block.2} parent=5 // pred_check
      _
    $region10: #{discriminator_cnn_block.2} parent=5 // pred_check_branch
      %169 = sbr.rel (%p166) target = $region12
    $region11: #{discriminator_cnn_block.2} parent=5 // pred_region
      %s170 = ssub.s32 %s11, 1
      // Predicated region
      $region13: #{discriminator_cnn_block.2} parent=11 // pred_check
        %p171 = pneg %p72
      $region14: #{discriminator_cnn_block.2} parent=11 // pred_check_branch
        %173 = sbr.rel (%p171) target = $region16
      $region15: #{discriminator_cnn_block.2} parent=11 // pred_region
        _
      $region16: #{discriminator_cnn_block.2} parent=11 // pred_fallthru
        _
    $region12: #{discriminator_cnn_block.2} parent=5 // pred_fallthru
      _
    %p174 = scmp.lt.s32.totalorder %s11, 2
    // Predicated region
    $region17: #{discriminator_cnn_block.2} parent=5 // pred_check
      %p175 = pneg %p174
    $region18: #{discriminator_cnn_block.2} parent=5 // pred_check_branch
      %177 = sbr.rel (%p175) target = $region20
    $region19: #{discriminator_cnn_block.2} parent=5 // pred_region
      // Predicated region
      $region21: #{discriminator_cnn_block.2} parent=19 // pred_check
        %p178 = pneg %p45
      $region22: #{discriminator_cnn_block.2} parent=19 // pred_check_branch
        %180 = sbr.rel (%p178) target = $region24
      $region23: #{discriminator_cnn_block.2} parent=19 // pred_region
        %s181 = smul.u32 16, %s19
        %p182 = scmp.lt.s32.totalorder %s18, 1
        %s183 = scalar_select %p182, %s18, 1
        %p184 = scmp.lt.s32.totalorder %s181, 15
        %s185 = scalar_select %p184, %s181, 15
        %s186 = smul.addr %s183, 16
        %s187 = sadd.s32 %s185, %s186
        %s188 = smul.addr %s187, 4
        %s189 = scalar_lea.vmem %s0, %s188
        %s190 = smul.u32 16, %s19
      $region24: #{discriminator_cnn_block.2} parent=19 // pred_fallthru
        _
    $region20: #{discriminator_cnn_block.2} parent=5 // pred_fallthru
      _
    %p191 = scmp.le.s32.totalorder 1, %s11
    %p192 = scmp.lt.s32.totalorder %s11, 3
    %p193 = pnand %p191, %p192
    %p194 = pneg %p193
    // Predicated region
    $region25: #{discriminator_cnn_block.2} parent=5 // pred_check
      _
    $region26: #{discriminator_cnn_block.2} parent=5 // pred_check_branch
      %196 = sbr.rel (%p193) target = $region28
    $region27: #{discriminator_cnn_block.2} parent=5 // pred_region
      %s197 = ssub.s32 %s11, 1
      %s198 = smul.u32 16, %s21
      %p199 = scmp.lt.s32.totalorder %s20, 1
      %s200 = scalar_select %p199, %s20, 1
      %p201 = scmp.lt.s32.totalorder %s198, 15
      %s202 = scalar_select %p201, %s198, 15
      %s203 = smul.addr %s200, 16
      %s204 = sadd.s32 %s202, %s203
      %s205 = smul.addr %s204, 4
      %s206 = scalar_lea.vmem %s0, %s205
      %p207 = pneg %p51
      %p208 = pneg %p48
      %p209 = pneg %p72
      %p210 = pneg %p69
      %p211 = pneg %p100
      %p212 = pneg %p97
      %s213 = smul.u32 16, %s21
      %p214 = scmp.lt.s32.totalorder %s20, 1
      %s215 = scalar_select %p214, %s20, 1
      %p216 = scmp.lt.s32.totalorder %s213, 15
      %s217 = scalar_select %p216, %s213, 15
      %s218 = smul.addr %s215, 16
      %s219 = sadd.s32 %s217, %s218
      %s220 = smul.addr %s219, 4
      %s221 = scalar_lea.vmem %s2, %s220
      %p222 = pneg %p128
      %p223 = pneg %p125
      %s224 = sadd.s32 %s20, %s21
      %p225 = scmp.lt.s32.totalorder %s224, 1
      %s226 = scalar_select %p225, %s224, 1
      %s227 = scalar_lea.vmem %s3, %s226
      %p228 = pneg %p156
      %p229 = pneg %p153
      %s230 = sadd.s32 %s20, %s21
      %p231 = scmp.lt.s32.totalorder %s230, 1
      %s232 = scalar_select %p231, %s230, 1
      %s233 = scalar_lea.vmem %s4, %s232
      %s234 = smul.u32 16, %s21
      %p235 = scmp.lt.s32.totalorder %s20, 1
      %s236 = scalar_select %p235, %s20, 1
      %p237 = scmp.lt.s32.totalorder %s234, 15
      %s238 = scalar_select %p237, %s234, 15
      %s239 = smul.addr %s236, 16
      %s240 = sadd.s32 %s238, %s239
      %s241 = smul.addr %s240, 4
      %s242 = scalar_lea.vmem %s0, %s241
      %s243 = smul.u32 16, %s21
      %s244 = smul.u32 16, %s21
      %p245 = scmp.lt.s32.totalorder %s20, 1
      %s246 = scalar_select %p245, %s20, 1
      %p247 = scmp.lt.s32.totalorder %s244, 15
      %s248 = scalar_select %p247, %s244, 15
      %s249 = smul.addr %s246, 16
      %s250 = sadd.s32 %s248, %s249
      %s251 = smul.addr %s250, 4
      %s252 = scalar_lea.vmem %s2, %s251
      %s253 = smul.u32 16, %s21
      %s254 = sadd.s32 %s20, %s21
      %p255 = scmp.lt.s32.totalorder %s254, 1
      %s256 = scalar_select %p255, %s254, 1
      %s257 = scalar_lea.vmem %s3, %s256
      %s258 = sadd.s32 %s20, %s21
      %s259 = sadd.s32 %s20, %s21
      %p260 = scmp.lt.s32.totalorder %s259, 1
      %s261 = scalar_select %p260, %s259, 1
      %s262 = scalar_lea.vmem %s4, %s261
      %s263 = sadd.s32 %s20, %s21
      %v264 = vld [vmem:[%s242] sm:$0xf]
      %v265 = vld [vmem:[%s242 + $0x4] sm:$0xf]
      %v266 = vld [vmem:[%s242 + $0x8] sm:$0xf]
      %v267 = vld [vmem:[%s242 + $0xc] sm:$0xf]
      %v268 = vld [vmem:[%s242 + $0x10] sm:$0xf]
      %v269 = vld [vmem:[%s242 + $0x14] sm:$0xf]
      %v270 = vld [vmem:[%s242 + $0x18] sm:$0xf]
      %v271 = vld [vmem:[%s242 + $0x1c] sm:$0xf]
      %v272 = vld [vmem:[%s242 + $0x20] sm:$0xf]
      %v273 = vld [vmem:[%s242 + $0x24] sm:$0xf]
      %v274 = vld [vmem:[%s242 + $0x28] sm:$0xf]
      %v275 = vld [vmem:[%s242 + $0x2c] sm:$0xf]
      %v276 = vld [vmem:[%s242 + $0x30] sm:$0xf]
      %v277 = vld [vmem:[%s242 + $0x34] sm:$0xf]
      %v278 = vld [vmem:[%s242 + $0x38] sm:$0xf]
      %v279 = vld [vmem:[%s242 + $0x3c] sm:$0xf]
      %v280 = vld [vmem:[%s1] sm:$0xf]
      %v281 = vld [vmem:[%s1 + $0x4] sm:$0xf]
      %v282 = vld [vmem:[%s1 + $0x8] sm:$0xf]
      %v283 = vld [vmem:[%s1 + $0xc] sm:$0xf]
      %v284 = vld [vmem:[%s1 + $0x10] sm:$0xf]
      %v285 = vld [vmem:[%s1 + $0x14] sm:$0xf]
      %v286 = vld [vmem:[%s1 + $0x18] sm:$0xf]
      %v287 = vld [vmem:[%s1 + $0x1c] sm:$0xf]
      %v288 = vld [vmem:[%s1 + $0x20] sm:$0xf]
      %v289 = vld [vmem:[%s1 + $0x24] sm:$0xf]
      %v290 = vld [vmem:[%s1 + $0x28] sm:$0xf]
      %v291 = vld [vmem:[%s1 + $0x2c] sm:$0xf]
      %v292 = vld [vmem:[%s1 + $0x30] sm:$0xf]
      %v293 = vld [vmem:[%s1 + $0x34] sm:$0xf]
      %v294 = vld [vmem:[%s1 + $0x38] sm:$0xf]
      %v295 = vld [vmem:[%s1 + $0x3c] sm:$0xf]
      %v312 = vunpack.c.l.b16 %v264
      %v313 = vunpack.c.l.b16 %v265
      %v314 = vunpack.c.l.b16 %v266
      %v315 = vunpack.c.l.b16 %v267
      %v316 = vunpack.c.l.b16 %v268
      %v317 = vunpack.c.l.b16 %v269
      %v318 = vunpack.c.l.b16 %v270
      %v319 = vunpack.c.l.b16 %v271
      %v320 = vunpack.c.l.b16 %v272
      %v321 = vunpack.c.l.b16 %v273
      %v322 = vunpack.c.l.b16 %v274
      %v323 = vunpack.c.l.b16 %v275
      %v324 = vunpack.c.l.b16 %v276
      %v325 = vunpack.c.l.b16 %v277
      %v326 = vunpack.c.l.b16 %v278
      %v327 = vunpack.c.l.b16 %v279
      %v328 = vpack.c.b16 %v313, %v312
      %v329 = vpack.c.b16 %v315, %v314
      %v330 = vpack.c.b16 %v317, %v316
      %v331 = vpack.c.b16 %v319, %v318
      %v332 = vpack.c.b16 %v321, %v320
      %v333 = vpack.c.b16 %v323, %v322
      %v334 = vpack.c.b16 %v325, %v324
      %v335 = vpack.c.b16 %v327, %v326
      %v360 = vunpack.c.l.b16 %v280
      %v361 = vunpack.c.l.b16 %v281
      %v362 = vunpack.c.l.b16 %v282
      %v363 = vunpack.c.l.b16 %v283
      %v364 = vunpack.c.l.b16 %v284
      %v365 = vunpack.c.l.b16 %v285
      %v366 = vunpack.c.l.b16 %v286
      %v367 = vunpack.c.l.b16 %v287
      %v368 = vunpack.c.l.b16 %v288
      %v369 = vunpack.c.l.b16 %v289
      %v370 = vunpack.c.l.b16 %v290
      %v371 = vunpack.c.l.b16 %v291
      %v372 = vunpack.c.l.b16 %v292
      %v373 = vunpack.c.l.b16 %v293
      %v374 = vunpack.c.l.b16 %v294
      %v375 = vunpack.c.l.b16 %v295
      %v376 = vpack.c.b16 %v361, %v360
      %v377 = vpack.c.b16 %v363, %v362
      %v378 = vpack.c.b16 %v365, %v364
      %v379 = vpack.c.b16 %v367, %v366
      %v380 = vpack.c.b16 %v369, %v368
      %v381 = vpack.c.b16 %v371, %v370
      %v382 = vpack.c.b16 %v373, %v372
      %v383 = vpack.c.b16 %v375, %v374
      %392 = vmatpush.bf16.msra.mxu0 %v383
      %393 = vmatpush.bf16.msra.mxu0 %v382
      %394 = vmatpush.bf16.msra.mxu0 %v381
      %395 = vmatpush.bf16.msra.mxu0 %v380
      %396 = vmatpush.bf16.msra.mxu0 %v379
      %397 = vmatpush.bf16.msra.mxu0 %v378
      %398 = vmatpush.bf16.msra.mxu0 %v377
      %399 = vmatpush.bf16.msra.mxu0 %v376
      %400 = vmatmul.bf16.gmra.mxu0 %v328
      %v401 = vpop.f32.mrf.mxu0
      %v402 = vadd.f32 0.0, %v401
      %v403 = vpop.f32.mrf.mxu0
      %v404 = vadd.f32 0.0, %v403
      %405 = vmatmul.bf16.gmra.mxu0 %v329
      %v406 = vpop.f32.mrf.mxu0
      %v407 = vadd.f32 0.0, %v406
      %v408 = vpop.f32.mrf.mxu0
      %v409 = vadd.f32 0.0, %v408
      %410 = vmatmul.bf16.gmra.mxu0 %v330
      %v411 = vpop.f32.mrf.mxu0
      %v412 = vadd.f32 0.0, %v411
      %v413 = vpop.f32.mrf.mxu0
      %v414 = vadd.f32 0.0, %v413
      %415 = vmatmul.bf16.gmra.mxu0 %v331
      %v416 = vpop.f32.mrf.mxu0
      %v417 = vadd.f32 0.0, %v416
      %v418 = vpop.f32.mrf.mxu0
      %v419 = vadd.f32 0.0, %v418
      %420 = vmatmul.bf16.gmra.mxu0 %v332
      %v421 = vpop.f32.mrf.mxu0
      %v422 = vadd.f32 0.0, %v421
      %v423 = vpop.f32.mrf.mxu0
      %v424 = vadd.f32 0.0, %v423
      %425 = vmatmul.bf16.gmra.mxu0 %v333
      %v426 = vpop.f32.mrf.mxu0
      %v427 = vadd.f32 0.0, %v426
      %v428 = vpop.f32.mrf.mxu0
      %v429 = vadd.f32 0.0, %v428
      %430 = vmatmul.bf16.gmra.mxu0 %v334
      %v431 = vpop.f32.mrf.mxu0
      %v432 = vadd.f32 0.0, %v431
      %v433 = vpop.f32.mrf.mxu0
      %v434 = vadd.f32 0.0, %v433
      %435 = vmatmul.bf16.gmra.mxu0 %v335
      %v436 = vpop.f32.mrf.mxu0
      %v437 = vadd.f32 0.0, %v436
      %v438 = vpop.f32.mrf.mxu0
      %v439 = vadd.f32 0.0, %v438
      %440 = vdwg.mxu0
      %v441 = vpack.c.bf16 %v402, %v402
      %v442 = vpack.c.bf16 %v404, %v404
      %v443 = vpack.c.bf16 %v407, %v407
      %v444 = vpack.c.bf16 %v409, %v409
      %v445 = vpack.c.bf16 %v412, %v412
      %v446 = vpack.c.bf16 %v414, %v414
      %v447 = vpack.c.bf16 %v417, %v417
      %v448 = vpack.c.bf16 %v419, %v419
      %v449 = vpack.c.bf16 %v422, %v422
      %v450 = vpack.c.bf16 %v424, %v424
      %v451 = vpack.c.bf16 %v427, %v427
      %v452 = vpack.c.bf16 %v429, %v429
      %v453 = vpack.c.bf16 %v432, %v432
      %v454 = vpack.c.bf16 %v434, %v434
      %v455 = vpack.c.bf16 %v437, %v437
      %v456 = vpack.c.bf16 %v439, %v439
      %457 = vst [vmem:[%s252] sm:$0xf] %v441
      %458 = vst [vmem:[%s252 + $0x4] sm:$0xf] %v442
      %459 = vst [vmem:[%s252 + $0x8] sm:$0xf] %v443
      %460 = vst [vmem:[%s252 + $0xc] sm:$0xf] %v444
      %461 = vst [vmem:[%s252 + $0x10] sm:$0xf] %v445
      %462 = vst [vmem:[%s252 + $0x14] sm:$0xf] %v446
      %463 = vst [vmem:[%s252 + $0x18] sm:$0xf] %v447
      %464 = vst [vmem:[%s252 + $0x1c] sm:$0xf] %v448
      %465 = vst [vmem:[%s252 + $0x20] sm:$0xf] %v449
      %466 = vst [vmem:[%s252 + $0x24] sm:$0xf] %v450
      %467 = vst [vmem:[%s252 + $0x28] sm:$0xf] %v451
      %468 = vst [vmem:[%s252 + $0x2c] sm:$0xf] %v452
      %469 = vst [vmem:[%s252 + $0x30] sm:$0xf] %v453
      %470 = vst [vmem:[%s252 + $0x34] sm:$0xf] %v454
      %471 = vst [vmem:[%s252 + $0x38] sm:$0xf] %v455
      %472 = vst [vmem:[%s252 + $0x3c] sm:$0xf] %v456
      %v473 = vadd.f32 %v402, %v404
      %v474 = vadd.f32 %v473, %v407
      %v475 = vadd.f32 %v474, %v409
      %v476 = vadd.f32 %v475, %v412
      %v477 = vadd.f32 %v476, %v414
      %v478 = vadd.f32 %v477, %v417
      %v479 = vadd.f32 %v478, %v419
      %v480 = vadd.f32 %v479, %v422
      %v481 = vadd.f32 %v480, %v424
      %v482 = vadd.f32 %v481, %v427
      %v483 = vadd.f32 %v482, %v429
      %v484 = vadd.f32 %v483, %v432
      %v485 = vadd.f32 %v484, %v434
      %v486 = vadd.f32 %v485, %v437
      %v487 = vadd.f32 %v486, %v439
      %v488 = vrot.slane %v487, 4
      %v489 = vadd.f32 %v487, %v488
      %v490 = vrot.slane %v489, 2
      %v491 = vadd.f32 %v489, %v490
      %v492 = vrot.slane %v491, 1
      %v493 = vadd.f32 %v491, %v492
      %494 = vst [vmem:[%s257] sm:$0x1] %v493
      %v495 = vmul.f32 %v402, %v402
      %v496 = vmul.f32 %v404, %v404
      %v497 = vmul.f32 %v407, %v407
      %v498 = vmul.f32 %v409, %v409
      %v499 = vmul.f32 %v412, %v412
      %v500 = vmul.f32 %v414, %v414
      %v501 = vmul.f32 %v417, %v417
      %v502 = vmul.f32 %v419, %v419
      %v503 = vmul.f32 %v422, %v422
      %v504 = vmul.f32 %v424, %v424
      %v505 = vmul.f32 %v427, %v427
      %v506 = vmul.f32 %v429, %v429
      %v507 = vmul.f32 %v432, %v432
      %v508 = vmul.f32 %v434, %v434
      %v509 = vmul.f32 %v437, %v437
      %v510 = vmul.f32 %v439, %v439
      %v511 = vadd.f32 %v495, %v496
      %v512 = vadd.f32 %v511, %v497
      %v513 = vadd.f32 %v512, %v498
      %v514 = vadd.f32 %v513, %v499
      %v515 = vadd.f32 %v514, %v500
      %v516 = vadd.f32 %v515, %v501
      %v517 = vadd.f32 %v516, %v502
      %v518 = vadd.f32 %v517, %v503
      %v519 = vadd.f32 %v518, %v504
      %v520 = vadd.f32 %v519, %v505
      %v521 = vadd.f32 %v520, %v506
      %v522 = vadd.f32 %v521, %v507
      %v523 = vadd.f32 %v522, %v508
      %v524 = vadd.f32 %v523, %v509
      %v525 = vadd.f32 %v524, %v510
      %v526 = vrot.slane %v525, 4
      %v527 = vadd.f32 %v525, %v526
      %v528 = vrot.slane %v527, 2
      %v529 = vadd.f32 %v527, %v528
      %v530 = vrot.slane %v529, 1
      %v531 = vadd.f32 %v529, %v530
      %532 = vst [vmem:[%s262] sm:$0x1] %v531
      %s533 = smul.u32 16, %s21
      %p534 = scmp.lt.s32.totalorder %s20, 1
      %s535 = scalar_select %p534, %s20, 1
      %p536 = scmp.lt.s32.totalorder %s533, 15
      %s537 = scalar_select %p536, %s533, 15
      %s538 = smul.addr %s535, 16
      %s539 = sadd.s32 %s537, %s538
      %s540 = smul.addr %s539, 4
      %s541 = scalar_lea.vmem %s2, %s540
      %s542 = sadd.s32 %s20, %s21
      %p543 = scmp.lt.s32.totalorder %s542, 1
      %s544 = scalar_select %p543, %s542, 1
      %s545 = scalar_lea.vmem %s3, %s544
      %s546 = sadd.s32 %s20, %s21
      %p547 = scmp.lt.s32.totalorder %s546, 1
      %s548 = scalar_select %p547, %s546, 1
      %s549 = scalar_lea.vmem %s4, %s548
      // Predicated region
      $region29: #{discriminator_cnn_block.2} parent=27 // pred_check
        %p550 = pneg %p97
      $region30: #{discriminator_cnn_block.2} parent=27 // pred_check_branch
        %552 = sbr.rel (%p550) target = $region32
      $region31: #{discriminator_cnn_block.2} parent=27 // pred_region
        %s553 = smul.u32 16, %s21
      $region32: #{discriminator_cnn_block.2} parent=27 // pred_fallthru
        _
      // Predicated region
      $region33: #{discriminator_cnn_block.2} parent=27 // pred_check
        %p554 = pneg %p125
      $region34: #{discriminator_cnn_block.2} parent=27 // pred_check_branch
        %556 = sbr.rel (%p554) target = $region36
      $region35: #{discriminator_cnn_block.2} parent=27 // pred_region
        %s557 = sadd.s32 %s20, %s21
      $region36: #{discriminator_cnn_block.2} parent=27 // pred_fallthru
        _
      // Predicated region
      $region37: #{discriminator_cnn_block.2} parent=27 // pred_check
        %p558 = pneg %p153
      $region38: #{discriminator_cnn_block.2} parent=27 // pred_check_branch
        %560 = sbr.rel (%p558) target = $region40
      $region39: #{discriminator_cnn_block.2} parent=27 // pred_region
        %s561 = sadd.s32 %s20, %s21
      $region40: #{discriminator_cnn_block.2} parent=27 // pred_fallthru
        _
    $region28: #{discriminator_cnn_block.2} parent=5 // pred_fallthru
      _
    %p562 = scmp.le.s32.totalorder 2, %s11
    // Predicated region
    $region41: #{discriminator_cnn_block.2} parent=5 // pred_check
      %p563 = pneg %p562
    $region42: #{discriminator_cnn_block.2} parent=5 // pred_check_branch
      %565 = sbr.rel (%p563) target = $region44
    $region43: #{discriminator_cnn_block.2} parent=5 // pred_region
      %s566 = ssub.s32 %s11, 2
      // Predicated region
      $region45: #{discriminator_cnn_block.2} parent=43 // pred_check
        %p567 = pneg %p103
      $region46: #{discriminator_cnn_block.2} parent=43 // pred_check_branch
        %569 = sbr.rel (%p567) target = $region48
      $region47: #{discriminator_cnn_block.2} parent=43 // pred_region
        %s570 = smul.u32 16, %s23
        %p571 = scmp.lt.s32.totalorder %s22, 1
        %s572 = scalar_select %p571, %s22, 1
        %p573 = scmp.lt.s32.totalorder %s570, 15
        %s574 = scalar_select %p573, %s570, 15
        %s575 = smul.addr %s572, 16
        %s576 = sadd.s32 %s574, %s575
        %s577 = smul.addr %s576, 4
        %s578 = scalar_lea.vmem %s2, %s577
      $region48: #{discriminator_cnn_block.2} parent=43 // pred_fallthru
        _
      // Predicated region
      $region49: #{discriminator_cnn_block.2} parent=43 // pred_check
        %p579 = pneg %p131
      $region50: #{discriminator_cnn_block.2} parent=43 // pred_check_branch
        %581 = sbr.rel (%p579) target = $region52
      $region51: #{discriminator_cnn_block.2} parent=43 // pred_region
        %s582 = sadd.s32 %s22, %s23
        %p583 = scmp.lt.s32.totalorder %s582, 1
        %s584 = scalar_select %p583, %s582, 1
        %s585 = scalar_lea.vmem %s3, %s584
      $region52: #{discriminator_cnn_block.2} parent=43 // pred_fallthru
        _
      // Predicated region
      $region53: #{discriminator_cnn_block.2} parent=43 // pred_check
        %p586 = pneg %p159
      $region54: #{discriminator_cnn_block.2} parent=43 // pred_check_branch
        %588 = sbr.rel (%p586) target = $region56
      $region55: #{discriminator_cnn_block.2} parent=43 // pred_region
        %s589 = sadd.s32 %s22, %s23
        %p590 = scmp.lt.s32.totalorder %s589, 1
        %s591 = scalar_select %p590, %s589, 1
        %s592 = scalar_lea.vmem %s4, %s591
      $region56: #{discriminator_cnn_block.2} parent=43 // pred_fallthru
        _
    $region44: #{discriminator_cnn_block.2} parent=5 // pred_fallthru
      _
  $region6: #{discriminator_cnn_block.2} parent=0 // loop_footer
    %s15 = sadd.s32 1, %s11
  $region7: #{discriminator_cnn_block.2} parent=0 // loop_footer_branch
    %10 = sbr.rel target = $region3
  $region8: #{discriminator_cnn_block.2} parent=0 // loop_exit
    _

</llo_original>
